<compile_context>
chip_gen: v6e
topology: v6e:2x2x1
jax: 0.10.0
libtpu: 0.0.40
codegen_flags: <defaults>
</compile_context>

<pallas_src>
import jax
import jax.numpy as jnp
from jax.experimental import pallas as pl
from jax.experimental.pallas import tpu as pltpu

# ----------------------------- model hyper-params ---------------------------
C, F1, D, F2 = 4, 4, 2, 8           # input channels, temporal filters, spatial-per-temporal, pointwise
FS, T, N = 8, 16, 2                 # sampling frequency, time points, batch
K1, PAD1 = FS // 2, FS // 4         # conv1 kernel / padding (width axis)
K3, PAD3 = FS // 2, FS // 4         # depthwise conv3 kernel / padding
DF1 = D * F1
T1 = T + 2 * PAD1 - K1 + 1          # width after conv1
T3 = T1 + 2 * PAD3 - K3 + 1         # width after depthwise conv3
POOL = 8
TP = T3 // POOL                     # pooled width
assert TP == T // POOL, "fc in_features F2*(T//8) must match pooled width"
BN_EPS = 1e-5
PREC = jax.lax.Precision.HIGHEST    # used only in glue / reference, not in the kernel

CT = C * T                          # folded front-end input width (64)
CTP = 128                           # CT zero-padded to a full lane width
H1 = DF1 * T1                       # folded front-end output width (136)
H3 = F2 * T3                        # folded back-end output width (144)
OUTP = 128                          # lane-dense output width (column 0 is the logit)

MAX_BN = 512                        # max batch rows per grid step
ROW_ALIGN = 16                      # bf16 sublane packing


# --------------------------------- kernel -----------------------------------
def _elu(y):
    # exp argument clamped to <=0 so it never overflows for positive y.
    return jnp.where(y > 0.0, y, jnp.exp(jnp.minimum(y, 0.0)) - 1.0)


def _stcnn_kernel(x_ref, wa_ref, ba_ref, wb_ref, bb_ref, wfin_ref, bfc_ref,
                  out_ref):
    # front end: conv1 + bn1 + conv2(max-norm) + bn2 folded into one matmul; ELU
    y2 = jnp.dot(x_ref[...], wa_ref[...],
                 preferred_element_type=jnp.float32) + ba_ref[...]
    y2 = _elu(y2)
    # back end: depthwise conv3 + pointwise conv3 + bn3 folded into one matmul; ELU
    y3 = jnp.dot(y2.astype(jnp.bfloat16), wb_ref[...],
                 preferred_element_type=jnp.float32) + bb_ref[...]
    y3 = _elu(y3)
    # avgpool(1,8) + flatten + constrained dense folded into one matmul + bias
    # (weight padded to 128 lanes -> unmasked lane-dense stores; col 0 is real)
    out_ref[...] = jnp.dot(y3.astype(jnp.bfloat16), wfin_ref[...],
                           preferred_element_type=jnp.float32) + bfc_ref[0]


# --------------------------- glue: fold parameters ---------------------------
def fold_params(params):
    """Folds all linear stages into three matrices + biases.

    Call ONCE per weight set (hoisted out of the per-forward path) and reuse
    the result for every forward call.
    """
    (w1, g1, be1, rm1, rv1, w2, g2, be2, rm2, rv2,
     w3d, w3p, g3, be3, rm3, rv3, wfc, bfc) = params

    # eval-mode BatchNorm -> per-channel scale / shift
    a1 = g1 / jnp.sqrt(rv1 + BN_EPS); b1 = be1 - rm1 * a1          # (F1,)
    a2 = g2 / jnp.sqrt(rv2 + BN_EPS); b2 = be2 - rm2 * a2          # (DF1,)
    a3 = g3 / jnp.sqrt(rv3 + BN_EPS); b3 = be3 - rm3 * a3          # (F2,)

    # ConstrainedConv2d max-norm (norm over out-channel dim, clamp to 1.0)
    w2m = w2.reshape(DF1, C)
    n2 = jnp.sqrt(jnp.sum(w2m * w2m, axis=0, keepdims=True))
    w2s = w2m * (jnp.clip(n2, 0.0, 1.0) / (1e-8 + n2))             # (DF1, C)

    # ConstrainedDense max-norm (out dim size 1 -> per-weight |w|, clamp 0.25)
    nfc = jnp.abs(wfc)
    wfcs = wfc * (jnp.clip(nfc, 0.0, 0.25) / (1e-8 + nfc))         # (1, F2*TP)

    # conv1 Toeplitz: m1[f, t, t1] = w1[f, t - t1 + PAD1] (valid taps only)
    w1f = w1.reshape(F1, K1)
    kk1 = jnp.arange(T)[:, None] - jnp.arange(T1)[None, :] + PAD1
    valid1 = (kk1 >= 0) & (kk1 < K1)
    m1 = jnp.where(valid1[None], w1f[:, jnp.clip(kk1, 0, K1 - 1)], 0.0)  # (F1, T, T1)

    # front map: x(C,T) -> y2(DF1,T1), conv1+bn1+conv2+bn2 as matrix + bias
    grp = jnp.arange(DF1) // D
    scale2 = (a2 * a1[grp])[:, None] * w2s                         # (DF1, C)
    m1g = m1[grp]                                                  # (DF1, T, T1)
    wa = jnp.einsum('oc,otu->ctou', scale2, m1g,
                    precision=PREC).reshape(CT, H1)                # (C*T, DF1*T1)
    ba = a2 * b1[grp] * jnp.sum(w2s, axis=1) + b2                  # (DF1,)
    ba = jnp.broadcast_to(ba[:, None], (DF1, T1)).reshape(1, H1)

    # back map: y2(DF1,T1) -> y3(F2,T3), depthwise+pointwise conv3 + bn3
    w3df = w3d.reshape(DF1, K3)
    kk3 = jnp.arange(T1)[:, None] - jnp.arange(T3)[None, :] + PAD3
    valid3 = (kk3 >= 0) & (kk3 < K3)
    m3 = jnp.where(valid3[None], w3df[:, jnp.clip(kk3, 0, K3 - 1)], 0.0)  # (DF1, T1, T3)
    scale3 = a3[:, None] * w3p.reshape(F2, DF1)                    # (F2, DF1)
    wb = jnp.einsum('qo,otu->otqu', scale3, m3,
                    precision=PREC).reshape(H1, H3)                # (DF1*T1, F2*T3)
    bb = jnp.broadcast_to(b3[:, None], (F2, T3)).reshape(1, H3)

    # final map: avgpool(1,8) + flatten (channel-major) + constrained dense
    wfc2 = wfcs.reshape(F2, TP)
    wpool = jnp.repeat(wfc2, POOL, axis=1) / POOL                  # (F2, TP*POOL)
    wpool = jnp.pad(wpool, ((0, 0), (0, T3 - TP * POOL)))          # (F2, T3)
    wfin = wpool.reshape(H3, 1)

    # kernel-ready form: bf16 MXU operands, lane-aligned padding.
    wa_k = jnp.pad(wa, ((0, CTP - CT), (0, 0))).astype(jnp.bfloat16)    # (128, H1)
    wb_k = wb.astype(jnp.bfloat16)                                      # (H1, H3)
    wfin_k = jnp.pad(wfin, ((0, 0), (0, OUTP - 1))).astype(jnp.bfloat16)  # (H3, 128)
    ba_k = ba.astype(jnp.float32)
    bb_k = bb.astype(jnp.float32)
    bfc_k = bfc.astype(jnp.float32)
    return wa_k, ba_k, wb_k, bb_k, wfin_k, bfc_k


# --------------------------- row-block selection -----------------------------
def _round_up(v, m):
    return ((v + m - 1) // m) * m


def _pick_row_block(nb):
    """Picks (rows-per-grid-step, padded batch) so that grid>=2 when possible
    (v7x dual TensorCore) and per-step work amortizes grid overhead."""
    rows = _round_up(nb, ROW_ALIGN)
    steps = max((rows + MAX_BN - 1) // MAX_BN,
                2 if rows >= 2 * ROW_ALIGN else 1)
    bn = _round_up((rows + steps - 1) // steps, ROW_ALIGN)
    npad = _round_up(rows, bn)
    return bn, npad


# --------------------------------- wrapper -----------------------------------
def spatiotemporal_cnn_forward(x, folded):
    """x: (nb, C, T); folded: result of fold_params(params)."""
    wa, ba, wb, bb, wfin, bfc = folded
    x = x.astype(jnp.float32)                                      # x.type(FloatTensor)
    nb = x.shape[0]

    bn, npad = _pick_row_block(nb)
    x_flat = jnp.pad(x.reshape(nb, CT),
                     ((0, npad - nb), (0, CTP - CT))).astype(jnp.bfloat16)

    flops = 2 * npad * (CTP * H1 + H1 * H3 + H3 * OUTP)
    bytes_accessed = (2 * (npad * CTP + CTP * H1 + H1 * H3 + H3 * OUTP)
                      + 4 * (H1 + H3 + 1 + npad * OUTP))

    out = pl.pallas_call(
        _stcnn_kernel,
        out_shape=jax.ShapeDtypeStruct((npad, OUTP), jnp.float32),
        grid=(npad // bn,),
        in_specs=[
            pl.BlockSpec((bn, CTP), lambda i: (i, 0)),             # x rows for this block
            pl.BlockSpec((CTP, H1), lambda i: (0, 0)),             # folded front matrix (bf16)
            pl.BlockSpec((1, H1), lambda i: (0, 0)),               # folded front bias (f32)
            pl.BlockSpec((H1, H3), lambda i: (0, 0)),              # folded back matrix (bf16)
            pl.BlockSpec((1, H3), lambda i: (0, 0)),               # folded back bias (f32)
            pl.BlockSpec((H3, OUTP), lambda i: (0, 0)),            # folded pool+fc weights (bf16)
            pl.BlockSpec(memory_space=pltpu.MemorySpace.SMEM),     # fc bias (scalar)
        ],
        out_specs=pl.BlockSpec((bn, OUTP), lambda i: (i, 0)),
        compiler_params=pltpu.CompilerParams(
            dimension_semantics=("parallel",)),
        cost_estimate=pl.CostEstimate(flops=flops,
                                      transcendentals=npad * (H1 + H3),
                                      bytes_accessed=bytes_accessed),
    )(x_flat, wa, ba, wb, bb, wfin, bfc)
    return out[:nb, :1]


# ------------------------- pure-JAX reference check --------------------------
def reference_forward(x, params):
    (w1, g1, be1, rm1, rv1, w2, g2, be2, rm2, rv2,
     w3d, w3p, g3, be3, rm3, rv3, wfc, bfc) = params
    x = x.astype(jnp.float32)
    nb = x.shape[0]
    # conv1
    xpad = jnp.pad(x, ((0, 0), (0, 0), (PAD1, PAD1)))
    w1f = w1.reshape(F1, K1)
    y1 = jnp.zeros((nb, F1, C, T1), jnp.float32)
    for k in range(K1):
        y1 = y1 + w1f[None, :, None, k:k + 1] * xpad[:, None, :, k:k + T1]
    a1 = g1 / jnp.sqrt(rv1 + BN_EPS); b1 = be1 - rm1 * a1
    y1 = y1 * a1[None, :, None, None] + b1[None, :, None, None]
    # conv2 (grouped, max-norm constrained)
    w2m = w2.reshape(DF1, C)
    n2 = jnp.sqrt(jnp.sum(w2m * w2m, axis=0, keepdims=True))
    w2s = w2m * (jnp.clip(n2, 0.0, 1.0) / (1e-8 + n2))
    y1g = y1[:, jnp.arange(DF1) // D, :, :]                        # (N, DF1, C, T1)
    y2 = jnp.einsum('oc,noct->not', w2s, y1g, precision=PREC)
    a2 = g2 / jnp.sqrt(rv2 + BN_EPS); b2 = be2 - rm2 * a2
    y2 = y2 * a2[None, :, None] + b2[None, :, None]
    y2 = jnp.where(y2 > 0.0, y2, jnp.exp(jnp.minimum(y2, 0.0)) - 1.0)
    # separable conv3
    zpad = jnp.pad(y2, ((0, 0), (0, 0), (PAD3, PAD3)))
    w3df = w3d.reshape(DF1, K3)
    y3d = jnp.zeros((nb, DF1, T3), jnp.float32)
    for k in range(K3):
        y3d = y3d + w3df[None, :, k:k + 1] * zpad[:, :, k:k + T3]
    y3 = jnp.einsum('qo,not->nqt', w3p.reshape(F2, DF1), y3d, precision=PREC)
    a3 = g3 / jnp.sqrt(rv3 + BN_EPS); b3 = be3 - rm3 * a3
    y3 = y3 * a3[None, :, None] + b3[None, :, None]
    y3 = jnp.where(y3 > 0.0, y3, jnp.exp(jnp.minimum(y3, 0.0)) - 1.0)
    # avgpool + flatten + constrained dense
    pooled = y3[:, :, :TP * POOL].reshape(nb, F2, TP, POOL).mean(axis=-1)
    flat = pooled.reshape(nb, F2 * TP)
    nfc = jnp.abs(wfc)
    wfcs = wfc * (jnp.clip(nfc, 0.0, 0.25) / (1e-8 + nfc))
    return jnp.dot(flat, wfcs.T, precision=PREC) + bfc[None, :]


# ----------------------------------- main ------------------------------------
if __name__ == "__main__":
    key = jax.random.PRNGKey(0)
    ks = jax.random.split(key, 19)
    w1  = 0.3 * jax.random.normal(ks[0], (F1, 1, 1, K1), jnp.float32)
    g1  = 1.0 + 0.1 * jax.random.normal(ks[1], (F1,), jnp.float32)
    be1 = 0.1 * jax.random.normal(ks[2], (F1,), jnp.float32)
    rm1 = 0.1 * jax.random.normal(ks[3], (F1,), jnp.float32)
    rv1 = 0.9 + 0.2 * jax.random.uniform(ks[4], (F1,), jnp.float32)
    w2  = 0.3 * jax.random.normal(ks[5], (DF1, 1, C, 1), jnp.float32)
    g2  = 1.0 + 0.1 * jax.random.normal(ks[6], (DF1,), jnp.float32)
    be2 = 0.1 * jax.random.normal(ks[7], (DF1,), jnp.float32)
    rm2 = 0.1 * jax.random.normal(ks[8], (DF1,), jnp.float32)
    rv2 = 0.9 + 0.2 * jax.random.uniform(ks[9], (DF1,), jnp.float32)
    w3d = 0.3 * jax.random.normal(ks[10], (DF1, 1, 1, K3), jnp.float32)
    w3p = 0.3 * jax.random.normal(ks[11], (F2, DF1, 1, 1), jnp.float32)
    g3  = 1.0 + 0.1 * jax.random.normal(ks[12], (F2,), jnp.float32)
    be3 = 0.1 * jax.random.normal(ks[13], (F2,), jnp.float32)
    rm3 = 0.1 * jax.random.normal(ks[14], (F2,), jnp.float32)
    rv3 = 0.9 + 0.2 * jax.random.uniform(ks[15], (F2,), jnp.float32)
    wfc = 0.3 * jax.random.normal(ks[16], (1, F2 * TP), jnp.float32)
    bfc = 0.1 * jax.random.normal(ks[17], (1,), jnp.float32)
    params = (w1, g1, be1, rm1, rv1, w2, g2, be2, rm2, rv2,
              w3d, w3p, g3, be3, rm3, rv3, wfc, bfc)

    x = jax.random.normal(ks[18], (N, C, T), jnp.float32)

    folded = fold_params(params)              # hoisted: fold once per weight set
    folded = jax.block_until_ready(folded)

    out = spatiotemporal_cnn_forward(x, folded)
    out = jax.block_until_ready(out)
    ref = reference_forward(x, params)

    assert out.shape == (N, 1) and out.dtype == jnp.float32
    # bf16 MXU operands (f32 accumulate) -> slightly looser tolerance than f32.
    if not jnp.allclose(out, ref, atol=1e-2, rtol=1e-2):
        raise AssertionError(f"Pallas output {out} != reference {ref}")
    print("KERNEL_OK")
</pallas_src>

<mosaic_0001>
module attributes {stable_mosaic.version = 11 : i64} {
  func.func @_stcnn_kernel(%arg0: i32, %arg1: memref<16x128xbf16, #tpu.memory_space<vmem>>, %arg2: memref<128x136xbf16, #tpu.memory_space<vmem>>, %arg3: memref<1x136xf32, #tpu.memory_space<vmem>>, %arg4: memref<136x144xbf16, #tpu.memory_space<vmem>>, %arg5: memref<1x144xf32, #tpu.memory_space<vmem>>, %arg6: memref<144x128xbf16, #tpu.memory_space<vmem>>, %arg7: memref<1xf32, #tpu.memory_space<smem>>, %arg8: memref<16x128xf32, #tpu.memory_space<vmem>>) attributes {dimension_semantics = [#tpu.dimension_semantics<parallel>], iteration_bounds = array<i64: 1>, scalar_prefetch = 0 : i64, scratch_operands = 0 : i64, tpu.core_type = #tpu.core_type<tc>, window_params = [{transform_indices = @transform_0, window_bounds = array<i64: 16, 128>}, {pipeline_mode = #tpu.pipeline_mode<synchronous>, transform_indices = @transform_1, window_bounds = array<i64: 128, 136>}, {pipeline_mode = #tpu.pipeline_mode<synchronous>, transform_indices = @transform_2, window_bounds = array<i64: 1, 136>}, {pipeline_mode = #tpu.pipeline_mode<synchronous>, transform_indices = @transform_3, window_bounds = array<i64: 136, 144>}, {pipeline_mode = #tpu.pipeline_mode<synchronous>, transform_indices = @transform_4, window_bounds = array<i64: 1, 144>}, {pipeline_mode = #tpu.pipeline_mode<synchronous>, transform_indices = @transform_5, window_bounds = array<i64: 144, 128>}, {transform_indices = @transform_6, window_bounds = array<i64: 1>}, {transform_indices = @transform_7, window_bounds = array<i64: 16, 128>}]} {
    %c0 = arith.constant 0 : index
    %c0_0 = arith.constant 0 : index
    %0 = vector.load %arg1[%c0, %c0_0] : memref<16x128xbf16, #tpu.memory_space<vmem>>, vector<16x128xbf16>
    %c0_1 = arith.constant 0 : index
    %c0_2 = arith.constant 0 : index
    %1 = vector.load %arg2[%c0_1, %c0_2] : memref<128x136xbf16, #tpu.memory_space<vmem>>, vector<128x136xbf16>
    %cst = arith.constant dense<0.000000e+00> : vector<16x136xf32>
    %2 = tpu.matmul %0, %1, %cst {dimension_numbers = #tpu.dot_dimension_numbers<[1], [0], [0], [1], [0, 0, 1, 1], [], []>} : vector<16x128xbf16>, vector<128x136xbf16>, vector<16x136xf32> -> vector<16x136xf32>
    %c0_3 = arith.constant 0 : index
    %c0_4 = arith.constant 0 : index
    %3 = vector.load %arg3[%c0_3, %c0_4] : memref<1x136xf32, #tpu.memory_space<vmem>>, vector<1x136xf32>
    %4 = vector.broadcast %3 : vector<1x136xf32> to vector<16x136xf32>
    %5 = arith.addf %2, %4 : vector<16x136xf32>
    %cst_5 = arith.constant 0.000000e+00 : f32
    %6 = vector.broadcast %cst_5 : f32 to vector<16x136xf32>
    %7 = arith.cmpf ogt, %5, %6 : vector<16x136xf32>
    %cst_6 = arith.constant 0.000000e+00 : f32
    %8 = vector.broadcast %cst_6 : f32 to vector<16x136xf32>
    %9 = arith.minimumf %5, %8 : vector<16x136xf32>
    %10 = math.exp %9 : vector<16x136xf32>
    %cst_7 = arith.constant 1.000000e+00 : f32
    %11 = vector.broadcast %cst_7 : f32 to vector<16x136xf32>
    %12 = arith.subf %10, %11 : vector<16x136xf32>
    %13 = arith.select %7, %5, %12 : vector<16x136xi1>, vector<16x136xf32>
    %14 = arith.truncf %13 : vector<16x136xf32> to vector<16x136xbf16>
    %c0_8 = arith.constant 0 : index
    %c0_9 = arith.constant 0 : index
    %15 = vector.load %arg4[%c0_8, %c0_9] : memref<136x144xbf16, #tpu.memory_space<vmem>>, vector<136x144xbf16>
    %cst_10 = arith.constant dense<0.000000e+00> : vector<16x144xf32>
    %16 = tpu.matmul %14, %15, %cst_10 {dimension_numbers = #tpu.dot_dimension_numbers<[1], [0], [0], [1], [0, 0, 1, 1], [], []>} : vector<16x136xbf16>, vector<136x144xbf16>, vector<16x144xf32> -> vector<16x144xf32>
    %c0_11 = arith.constant 0 : index
    %c0_12 = arith.constant 0 : index
    %17 = vector.load %arg5[%c0_11, %c0_12] : memref<1x144xf32, #tpu.memory_space<vmem>>, vector<1x144xf32>
    %18 = vector.broadcast %17 : vector<1x144xf32> to vector<16x144xf32>
    %19 = arith.addf %16, %18 : vector<16x144xf32>
    %cst_13 = arith.constant 0.000000e+00 : f32
    %20 = vector.broadcast %cst_13 : f32 to vector<16x144xf32>
    %21 = arith.cmpf ogt, %19, %20 : vector<16x144xf32>
    %cst_14 = arith.constant 0.000000e+00 : f32
    %22 = vector.broadcast %cst_14 : f32 to vector<16x144xf32>
    %23 = arith.minimumf %19, %22 : vector<16x144xf32>
    %24 = math.exp %23 : vector<16x144xf32>
    %cst_15 = arith.constant 1.000000e+00 : f32
    %25 = vector.broadcast %cst_15 : f32 to vector<16x144xf32>
    %26 = arith.subf %24, %25 : vector<16x144xf32>
    %27 = arith.select %21, %19, %26 : vector<16x144xi1>, vector<16x144xf32>
    %28 = arith.truncf %27 : vector<16x144xf32> to vector<16x144xbf16>
    %c0_16 = arith.constant 0 : index
    %c0_17 = arith.constant 0 : index
    %29 = vector.load %arg6[%c0_16, %c0_17] : memref<144x128xbf16, #tpu.memory_space<vmem>>, vector<144x128xbf16>
    %cst_18 = arith.constant dense<0.000000e+00> : vector<16x128xf32>
    %30 = tpu.matmul %28, %29, %cst_18 {dimension_numbers = #tpu.dot_dimension_numbers<[1], [0], [0], [1], [0, 0, 1, 1], [], []>} : vector<16x144xbf16>, vector<144x128xbf16>, vector<16x128xf32> -> vector<16x128xf32>
    %c0_19 = arith.constant 0 : index
    %31 = memref.load %arg7[%c0_19] : memref<1xf32, #tpu.memory_space<smem>>
    %32 = vector.broadcast %31 : f32 to vector<16x128xf32>
    %33 = arith.addf %30, %32 : vector<16x128xf32>
    %c0_20 = arith.constant 0 : index
    %c0_21 = arith.constant 0 : index
    %34 = vector.load %arg8[%c0_20, %c0_21] : memref<16x128xf32, #tpu.memory_space<vmem>>, vector<16x128xf32>
    tpu.vector_store %arg8[%c0_20, %c0_21], %33 {strides = array<i32>} : memref<16x128xf32, #tpu.memory_space<vmem>>, vector<16x128xf32>,
    return
  }
  func.func @transform_0(%arg0: i32) -> (i32, i32) {
    %c0_i32 = arith.constant 0 : i32
    %c0_i32_0 = arith.constant 0 : i32
    return %arg0, %c0_i32 : i32, i32
  }
  func.func @transform_1(%arg0: i32) -> (i32, i32) {
    %c0_i32 = arith.constant 0 : i32
    %c0_i32_0 = arith.constant 0 : i32
    %c0_i32_1 = arith.constant 0 : i32
    return %c0_i32, %c0_i32_0 : i32, i32
  }
  func.func @transform_2(%arg0: i32) -> (i32, i32) {
    %c0_i32 = arith.constant 0 : i32
    %c0_i32_0 = arith.constant 0 : i32
    %c0_i32_1 = arith.constant 0 : i32
    return %c0_i32, %c0_i32_0 : i32, i32
  }
  func.func @transform_3(%arg0: i32) -> (i32, i32) {
    %c0_i32 = arith.constant 0 : i32
    %c0_i32_0 = arith.constant 0 : i32
    %c0_i32_1 = arith.constant 0 : i32
    return %c0_i32, %c0_i32_0 : i32, i32
  }
  func.func @transform_4(%arg0: i32) -> (i32, i32) {
    %c0_i32 = arith.constant 0 : i32
    %c0_i32_0 = arith.constant 0 : i32
    %c0_i32_1 = arith.constant 0 : i32
    return %c0_i32, %c0_i32_0 : i32, i32
  }
  func.func @transform_5(%arg0: i32) -> (i32, i32) {
    %c0_i32 = arith.constant 0 : i32
    %c0_i32_0 = arith.constant 0 : i32
    %c0_i32_1 = arith.constant 0 : i32
    return %c0_i32, %c0_i32_0 : i32, i32
  }
  func.func @transform_6(%arg0: i32) -> i32 {
    %c0_i32 = arith.constant 0 : i32
    %c0_i32_0 = arith.constant 0 : i32
    return %c0_i32 : i32
  }
  func.func @transform_7(%arg0: i32) -> (i32, i32) {
    %c0_i32 = arith.constant 0 : i32
    %c0_i32_0 = arith.constant 0 : i32
    return %arg0, %c0_i32 : i32, i32
  }
}

</mosaic_0001>

<llo_original>
// kernel: tpu_custom_call.1
$region0: #{tpu_custom_call.1}
  #allocation0 [shape = 'u32[]', space=smem, size = 0x4, offset = 0x4, fixed_abs, tag = 'smem constant byte address 0x4 - core index']
  #allocation1 [shape = 'u32[144,128]{1,0:T(1,128)}', space=vmem, size = 0x12000, scoped, tag = 'internal scratch']
  #allocation2 [shape = 'f32[1]{0:T(128)S(6)}', space=smem, size = 0x200, scoped, tag = 'scoped memory for tpu_custom_call.1']
  %s0 = inlined_call_operand.vmem [shape: bf16[16,128], index: 0, kind: input, shape index: {}]
  %s1 = inlined_call_operand.vmem [shape: bf16[128,136], index: 1, kind: input, shape index: {}]
  %s2 = inlined_call_operand.vmem [shape: f32[1,136], index: 2, kind: input, shape index: {}]
  %s3 = inlined_call_operand.vmem [shape: bf16[136,144], index: 3, kind: input, shape index: {}]
  %s4 = inlined_call_operand.vmem [shape: f32[1,144], index: 4, kind: input, shape index: {}]
  %s5 = inlined_call_operand.hbm [shape: bf16[144,128], index: 5, kind: input, shape index: {}]
  %s6 = inlined_call_operand.<no memory space> [shape: f32[1], index: 6, kind: input, shape index: {}]
  %s7 = inlined_call_operand.hbm [shape: f32[16,128], index: 7, kind: output, shape index: {}]
  %s8 = sld [smem:[#allocation0]]
  $region42: #{tpu_custom_call.1} parent=0
    _
  %s10 = ssub.s32 1, %s8
  %s11 = scalar_select 0, %s10, %s8
  %12 = sst [smem:[#allocation2]] %s6
  $region1: #{tpu_custom_call.1} parent=0
    #allocation3 [shape = 'u8[36864]{0}', space=vmem, size = 0x9000, scoped, tag = 'input window, operand 5, single buffered']
    #allocation4 [shape = 's32[1]{0}', space=sflag, size = 0x4, scoped, tag = 'scoped memory for tpu_custom_call.1']
    #allocation5 [shape = 's32[1]{0}', space=sflag, size = 0x4, scoped, tag = 'scoped memory for tpu_custom_call.1']
    #allocation6 [shape = 'u8[8192]{0}', space=vmem, size = 0x2000, scoped, tag = 'output window, operand 0, single buffered']
    %13 = vsyncpa [#allocation4], 0
    %14 = vsyncpa [#allocation5], 0
    // Predicated region
    $region2: #{tpu_custom_call.1} parent=1 // pred_check
      _
    $region3: #{tpu_custom_call.1} parent=1 // pred_check_branch
      %16 = sbr.rel (0) target = $region5
    $region4: #{tpu_custom_call.1} parent=1 // pred_region
      _
    $region5: #{tpu_custom_call.1} parent=1 // pred_fallthru
      _
    // Predicated region
    $region6: #{tpu_custom_call.1} parent=1 // pred_check
      _
    $region7: #{tpu_custom_call.1} parent=1 // pred_check_branch
      %18 = sbr.rel (0) target = $region9
    $region8: #{tpu_custom_call.1} parent=1 // pred_region
      _
    $region9: #{tpu_custom_call.1} parent=1 // pred_fallthru
      _
    // Predicated region
    $region10: #{tpu_custom_call.1} parent=1 // pred_check
      _
    $region11: #{tpu_custom_call.1} parent=1 // pred_check_branch
      %20 = sbr.rel (0) target = $region13
    $region12: #{tpu_custom_call.1} parent=1 // pred_region
      _
    $region13: #{tpu_custom_call.1} parent=1 // pred_fallthru
      _
    // Predicated region
    $region14: #{tpu_custom_call.1} parent=1 // pred_check
      _
    $region15: #{tpu_custom_call.1} parent=1 // pred_check_branch
      %22 = sbr.rel (0) target = $region17
    $region16: #{tpu_custom_call.1} parent=1 // pred_region
      _
    $region17: #{tpu_custom_call.1} parent=1 // pred_fallthru
      _
    // Predicated region
    $region18: #{tpu_custom_call.1} parent=1 // pred_check
      _
    $region19: #{tpu_custom_call.1} parent=1 // pred_check_branch
      %24 = sbr.rel (0) target = $region21
    $region20: #{tpu_custom_call.1} parent=1 // pred_region
      _
    $region21: #{tpu_custom_call.1} parent=1 // pred_fallthru
      _
    // Predicated region
    $region22: #{tpu_custom_call.1} parent=1 // pred_check
      _
    $region23: #{tpu_custom_call.1} parent=1 // pred_check_branch
      %26 = sbr.rel (0) target = $region25
    $region24: #{tpu_custom_call.1} parent=1 // pred_region
      %s28 = ssub.s32 1152, 1152
      %29 = vsyncadd [#allocation4], %s28
      %s30 = sshll.u32 [#allocation3], 4
      %s31 = int_to_ptr.vmem [resolvable:$true] %s30
      %36 = dma.hbm_to_vmem [thread:$0]  %s5, 1152, %s31, [#allocation4], 64, 64, 4
    $region25: #{tpu_custom_call.1} parent=1 // pred_fallthru
      _
    // Predicated region
    $region26: #{tpu_custom_call.1} parent=1 // pred_check
      _
    $region27: #{tpu_custom_call.1} parent=1 // pred_check_branch
      %38 = sbr.rel (0) target = $region29
    $region28: #{tpu_custom_call.1} parent=1 // pred_region
      _
    $region29: #{tpu_custom_call.1} parent=1 // pred_fallthru
      _
    // Predicated region
    $region30: #{tpu_custom_call.1} parent=1 // pred_check
      _
    $region31: #{tpu_custom_call.1} parent=1 // pred_check_branch
      %40 = sbr.rel (0) target = $region33
    $region32: #{tpu_custom_call.1} parent=1 // pred_region
      %41 = dma.done [#allocation4], 1152
    $region33: #{tpu_custom_call.1} parent=1 // pred_fallthru
      _
    %v43 = vld [vmem:[%s0] sm:$0xf]
    %v44 = vld [vmem:[%s0 + $0x4] sm:$0xf]
    %v45 = vld [vmem:[%s1] sm:$0xff]
    %v46 = vld [vmem:[%s1 + $0x8] sm:$0xff]
    %v47 = vld [vmem:[%s1 + $0x10] sm:$0xff]
    %v48 = vld [vmem:[%s1 + $0x18] sm:$0xff]
    %v49 = vld [vmem:[%s1 + $0x20] sm:$0xff]
    %v50 = vld [vmem:[%s1 + $0x28] sm:$0xff]
    %v51 = vld [vmem:[%s1 + $0x30] sm:$0xff]
    %v52 = vld [vmem:[%s1 + $0x38] sm:$0xff]
    %v53 = vld [vmem:[%s1 + $0x40] sm:$0xff]
    %v54 = vld [vmem:[%s1 + $0x48] sm:$0xff]
    %v55 = vld [vmem:[%s1 + $0x50] sm:$0xff]
    %v56 = vld [vmem:[%s1 + $0x58] sm:$0xff]
    %v57 = vld [vmem:[%s1 + $0x60] sm:$0xff]
    %v58 = vld [vmem:[%s1 + $0x68] sm:$0xff]
    %v59 = vld [vmem:[%s1 + $0x70] sm:$0xff]
    %v60 = vld [vmem:[%s1 + $0x78] sm:$0xff]
    %v61 = vld [vmem:[%s2] sm:$0x3]
    %v63 = vlaneseq
    %v64 = vshrl.u32 %v63, 7
    %v65 = vsub.s32 0, %v64
    %v66 = vrot.slane %v61, %v65
    %v67 = vlaneseq
    %v68 = vshrl.u32 %v67, 7
    %v69 = vsub.s32 1, %v68
    %v70 = vrot.slane %v61, %v69
    %v75 = vunpack.c.l.b16 %v43
    %v76 = vunpack.c.l.b16 %v44
    %v77 = vpack.c.b16 %v76, %v75
    %v95 = vunpack.c.l.b16 %v45
    %v96 = vunpack.c.h.b16 %v45
    %v97 = vunpack.c.l.b16 %v46
    %v98 = vunpack.c.h.b16 %v46
    %v99 = vunpack.c.l.b16 %v47
    %v100 = vunpack.c.h.b16 %v47
    %v101 = vunpack.c.l.b16 %v48
    %v102 = vunpack.c.h.b16 %v48
    %v103 = vunpack.c.l.b16 %v49
    %v104 = vunpack.c.h.b16 %v49
    %v105 = vunpack.c.l.b16 %v50
    %v106 = vunpack.c.h.b16 %v50
    %v107 = vunpack.c.l.b16 %v51
    %v108 = vunpack.c.h.b16 %v51
    %v109 = vunpack.c.l.b16 %v52
    %v110 = vunpack.c.h.b16 %v52
    %v111 = vunpack.c.l.b16 %v53
    %v112 = vunpack.c.h.b16 %v53
    %v113 = vunpack.c.l.b16 %v54
    %v114 = vunpack.c.h.b16 %v54
    %v115 = vunpack.c.l.b16 %v55
    %v116 = vunpack.c.h.b16 %v55
    %v117 = vunpack.c.l.b16 %v56
    %v118 = vunpack.c.h.b16 %v56
    %v119 = vunpack.c.l.b16 %v57
    %v120 = vunpack.c.h.b16 %v57
    %v121 = vunpack.c.l.b16 %v58
    %v122 = vunpack.c.h.b16 %v58
    %v123 = vunpack.c.l.b16 %v59
    %v124 = vunpack.c.h.b16 %v59
    %v125 = vunpack.c.l.b16 %v60
    %v126 = vunpack.c.h.b16 %v60
    %v127 = vpack.c.b16 %v97, %v95
    %v128 = vpack.c.b16 %v98, %v96
    %v129 = vpack.c.b16 %v101, %v99
    %v130 = vpack.c.b16 %v102, %v100
    %v131 = vpack.c.b16 %v105, %v103
    %v132 = vpack.c.b16 %v106, %v104
    %v133 = vpack.c.b16 %v109, %v107
    %v134 = vpack.c.b16 %v110, %v108
    %v135 = vpack.c.b16 %v113, %v111
    %v136 = vpack.c.b16 %v114, %v112
    %v137 = vpack.c.b16 %v117, %v115
    %v138 = vpack.c.b16 %v118, %v116
    %v139 = vpack.c.b16 %v121, %v119
    %v140 = vpack.c.b16 %v122, %v120
    %v141 = vpack.c.b16 %v125, %v123
    %v142 = vpack.c.b16 %v126, %v124
    %159 = vmatprep.subr.bf16.mxu0 %v142
    %160 = vmatpush1.bf16.msra.mxu0 %v141
    %161 = vmatprep.subr.bf16.mxu0 %v140
    %162 = vmatpush1.bf16.msra.mxu0 %v139
    %163 = vmatprep.subr.bf16.mxu0 %v138
    %164 = vmatpush1.bf16.msra.mxu0 %v137
    %165 = vmatprep.subr.bf16.mxu0 %v136
    %166 = vmatpush1.bf16.msra.mxu0 %v135
    %167 = vmatprep.subr.bf16.mxu0 %v134
    %168 = vmatpush1.bf16.msra.mxu0 %v133
    %169 = vmatprep.subr.bf16.mxu0 %v132
    %170 = vmatpush1.bf16.msra.mxu0 %v131
    %171 = vmatprep.subr.bf16.mxu0 %v130
    %172 = vmatpush1.bf16.msra.mxu0 %v129
    %173 = vmatprep.subr.bf16.mxu0 %v128
    %174 = vmatpush1.bf16.msra.mxu0 %v127
    %175 = vmatprep.subr.bf16.mxu0 0
    %176 = vmatpush2.bf16.msra.mxu0 0
    %177 = vmatprep.subr.bf16.mxu0 0
    %178 = vmatpush2.bf16.msra.mxu0 0
    %179 = vmatprep.subr.bf16.mxu0 0
    %180 = vmatpush2.bf16.msra.mxu0 0
    %181 = vmatprep.subr.bf16.mxu0 0
    %182 = vmatpush2.bf16.msra.mxu0 0
    %183 = vmatprep.subr.bf16.mxu0 0
    %184 = vmatpush2.bf16.msra.mxu0 0
    %185 = vmatprep.subr.bf16.mxu0 0
    %186 = vmatpush2.bf16.msra.mxu0 0
    %187 = vmatprep.subr.bf16.mxu0 0
    %188 = vmatpush2.bf16.msra.mxu0 0
    %189 = vmatprep.subr.bf16.mxu0 0
    %190 = vmatpush2.bf16.msra.mxu0 0
    %191 = vmatprep.mubr.bf16.mxu0 0
    %192 = vmatmul.mubr.bf16.gmra.mxu0 %v77
    %v193 = vpop.f32.mrf.mxu0
    %v194 = vadd.f32 %v66, %v193
    %v195 = vpop.f32.mrf.mxu0
    %v196 = vadd.f32 %v70, %v195
    %v197 = vpop.f32.mrf.mxu0
    %v198 = vadd.f32 %v66, %v197
    %v199 = vpop.f32.mrf.mxu0
    %v200 = vadd.f32 %v70, %v199
    %201 = vdwg.mxu0
    %vm202 = vcmp.gt.f32.partialorder %v194, 0.0
    %vm203 = vcmp.gt.f32.partialorder %v196, 0.0
    %vm204 = vcmp.gt.f32.partialorder %v198, 0.0
    %vm205 = vcmp.gt.f32.partialorder %v200, 0.0
    %v206 = vmin.f32 %v194, 0.0
    %v207 = vmin.f32 %v196, 0.0
    %v208 = vmin.f32 %v198, 0.0
    %v209 = vmin.f32 %v200, 0.0
    %v210 = vmul.f32 %v206, 1.442695
    %v211 = vpow.pop %v210
    %v212 = vmul.f32 %v207, 1.442695
    %v213 = vpow.pop %v212
    %v214 = vmul.f32 %v208, 1.442695
    %v215 = vpow.pop %v214
    %v216 = vmul.f32 %v209, 1.442695
    %v217 = vpow.pop %v216
    %v218 = vsub.f32 %v211, 1.0
    %v219 = vsub.f32 %v213, 1.0
    %v220 = vsub.f32 %v215, 1.0
    %v221 = vsub.f32 %v217, 1.0
    %v222 = vsel %vm202, %v194, %v218
    %v223 = vsel %vm203, %v196, %v219
    %v224 = vsel %vm204, %v198, %v220
    %v225 = vsel %vm205, %v200, %v221
    %v226 = vpack.c.bf16 %v224, %v222
    %v227 = vpack.c.bf16 %v225, %v223
    %v228 = vld [vmem:[%s3] sm:$0xff]
    %v229 = vld [vmem:[%s3 + $0x8] sm:$0xff]
    %v230 = vld [vmem:[%s3 + $0x10] sm:$0xff]
    %v231 = vld [vmem:[%s3 + $0x18] sm:$0xff]
    %v232 = vld [vmem:[%s3 + $0x20] sm:$0xff]
    %v233 = vld [vmem:[%s3 + $0x28] sm:$0xff]
    %v234 = vld [vmem:[%s3 + $0x30] sm:$0xff]
    %v235 = vld [vmem:[%s3 + $0x38] sm:$0xff]
    %v236 = vld [vmem:[%s3 + $0x40] sm:$0xff]
    %v237 = vld [vmem:[%s3 + $0x48] sm:$0xff]
    %v238 = vld [vmem:[%s3 + $0x50] sm:$0xff]
    %v239 = vld [vmem:[%s3 + $0x58] sm:$0xff]
    %v240 = vld [vmem:[%s3 + $0x60] sm:$0xff]
    %v241 = vld [vmem:[%s3 + $0x68] sm:$0xff]
    %v242 = vld [vmem:[%s3 + $0x70] sm:$0xff]
    %v243 = vld [vmem:[%s3 + $0x78] sm:$0xff]
    %v244 = vld [vmem:[%s3 + $0x80] sm:$0xff]
    %v245 = vld [vmem:[%s4] sm:$0x3]
    %v247 = vlaneseq
    %v248 = vshrl.u32 %v247, 7
    %v249 = vsub.s32 0, %v248
    %v250 = vrot.slane %v245, %v249
    %v251 = vlaneseq
    %v252 = vshrl.u32 %v251, 7
    %v253 = vsub.s32 1, %v252
    %v254 = vrot.slane %v245, %v253
    %v274 = vunpack.c.l.b16 %v228
    %v275 = vunpack.c.h.b16 %v228
    %v276 = vunpack.c.l.b16 %v229
    %v277 = vunpack.c.h.b16 %v229
    %v278 = vunpack.c.l.b16 %v230
    %v279 = vunpack.c.h.b16 %v230
    %v280 = vunpack.c.l.b16 %v231
    %v281 = vunpack.c.h.b16 %v231
    %v282 = vunpack.c.l.b16 %v232
    %v283 = vunpack.c.h.b16 %v232
    %v284 = vunpack.c.l.b16 %v233
    %v285 = vunpack.c.h.b16 %v233
    %v286 = vunpack.c.l.b16 %v234
    %v287 = vunpack.c.h.b16 %v234
    %v288 = vunpack.c.l.b16 %v235
    %v289 = vunpack.c.h.b16 %v235
    %v290 = vunpack.c.l.b16 %v236
    %v291 = vunpack.c.h.b16 %v236
    %v292 = vunpack.c.l.b16 %v237
    %v293 = vunpack.c.h.b16 %v237
    %v294 = vunpack.c.l.b16 %v238
    %v295 = vunpack.c.h.b16 %v238
    %v296 = vunpack.c.l.b16 %v239
    %v297 = vunpack.c.h.b16 %v239
    %v298 = vunpack.c.l.b16 %v240
    %v299 = vunpack.c.h.b16 %v240
    %v300 = vunpack.c.l.b16 %v241
    %v301 = vunpack.c.h.b16 %v241
    %v302 = vunpack.c.l.b16 %v242
    %v303 = vunpack.c.h.b16 %v242
    %v304 = vunpack.c.l.b16 %v243
    %v305 = vunpack.c.h.b16 %v243
    %v306 = vunpack.c.l.b16 %v244
    %v307 = vunpack.c.h.b16 %v244
    %v308 = vpack.c.b16 %v276, %v274
    %v309 = vpack.c.b16 %v277, %v275
    %v310 = vpack.c.b16 %v280, %v278
    %v311 = vpack.c.b16 %v281, %v279
    %v312 = vpack.c.b16 %v284, %v282
    %v313 = vpack.c.b16 %v285, %v283
    %v314 = vpack.c.b16 %v288, %v286
    %v315 = vpack.c.b16 %v289, %v287
    %v316 = vpack.c.b16 %v292, %v290
    %v317 = vpack.c.b16 %v293, %v291
    %v318 = vpack.c.b16 %v296, %v294
    %v319 = vpack.c.b16 %v297, %v295
    %v320 = vpack.c.b16 %v300, %v298
    %v321 = vpack.c.b16 %v301, %v299
    %v322 = vpack.c.b16 %v304, %v302
    %v323 = vpack.c.b16 %v305, %v303
    %v324 = vpack.c.b16 %v306, %v306
    %v325 = vpack.c.b16 %v307, %v307
    %vm342 = vcmask 64512
    %v344 = vsel %vm342, %v227, 0
    %vm346 = vcmask 1043456
    %v348 = vsel %vm346, %v324, 0
    %v351 = vsel %vm346, %v325, 0
    %353 = vmatprep.subr.bf16.mxu0 %v323
    %354 = vmatpush1.bf16.msra.mxu0 %v322
    %355 = vmatprep.subr.bf16.mxu0 %v321
    %356 = vmatpush1.bf16.msra.mxu0 %v320
    %357 = vmatprep.subr.bf16.mxu0 %v319
    %358 = vmatpush1.bf16.msra.mxu0 %v318
    %359 = vmatprep.subr.bf16.mxu0 %v317
    %360 = vmatpush1.bf16.msra.mxu0 %v316
    %361 = vmatprep.subr.bf16.mxu0 %v315
    %362 = vmatpush1.bf16.msra.mxu0 %v314
    %363 = vmatprep.subr.bf16.mxu0 %v313
    %364 = vmatpush1.bf16.msra.mxu0 %v312
    %365 = vmatprep.subr.bf16.mxu0 %v311
    %366 = vmatpush1.bf16.msra.mxu0 %v310
    %367 = vmatprep.subr.bf16.mxu0 %v309
    %368 = vmatpush1.bf16.msra.mxu0 %v308
    %369 = vmatprep.subr.bf16.mxu0 0
    %370 = vmatpush2.bf16.msra.mxu0 0
    %371 = vmatprep.subr.bf16.mxu0 0
    %372 = vmatpush2.bf16.msra.mxu0 0
    %373 = vmatprep.subr.bf16.mxu0 0
    %374 = vmatpush2.bf16.msra.mxu0 0
    %375 = vmatprep.subr.bf16.mxu0 0
    %376 = vmatpush2.bf16.msra.mxu0 0
    %377 = vmatprep.subr.bf16.mxu0 0
    %378 = vmatpush2.bf16.msra.mxu0 0
    %379 = vmatprep.subr.bf16.mxu0 0
    %380 = vmatpush2.bf16.msra.mxu0 0
    %381 = vmatprep.subr.bf16.mxu0 0
    %382 = vmatpush2.bf16.msra.mxu0 0
    %383 = vmatprep.subr.bf16.mxu0 %v351
    %384 = vmatpush2.bf16.msra.mxu0 %v348
    %385 = vmatprep.mubr.bf16.mxu0 %v344
    %386 = vmatmul.mubr.bf16.gmra.mxu0 %v226
    %v387 = vpop.f32.mrf.mxu0
    %v388 = vadd.f32 %v250, %v387
    %v389 = vpop.f32.mrf.mxu0
    %v390 = vadd.f32 %v254, %v389
    %v391 = vpop.f32.mrf.mxu0
    %v392 = vadd.f32 %v250, %v391
    %v393 = vpop.f32.mrf.mxu0
    %v394 = vadd.f32 %v254, %v393
    %395 = vdwg.mxu0
    %vm396 = vcmp.gt.f32.partialorder %v388, 0.0
    %vm397 = vcmp.gt.f32.partialorder %v390, 0.0
    %vm398 = vcmp.gt.f32.partialorder %v392, 0.0
    %vm399 = vcmp.gt.f32.partialorder %v394, 0.0
    %v400 = vmin.f32 %v388, 0.0
    %v401 = vmin.f32 %v390, 0.0
    %v402 = vmin.f32 %v392, 0.0
    %v403 = vmin.f32 %v394, 0.0
    %v404 = vmul.f32 %v400, 1.442695
    %v405 = vpow.pop %v404
    %v406 = vmul.f32 %v401, 1.442695
    %v407 = vpow.pop %v406
    %v408 = vmul.f32 %v402, 1.442695
    %v409 = vpow.pop %v408
    %v410 = vmul.f32 %v403, 1.442695
    %v411 = vpow.pop %v410
    %v412 = vsub.f32 %v405, 1.0
    %v413 = vsub.f32 %v407, 1.0
    %v414 = vsub.f32 %v409, 1.0
    %v415 = vsub.f32 %v411, 1.0
    %v416 = vsel %vm396, %v388, %v412
    %v417 = vsel %vm397, %v390, %v413
    %v418 = vsel %vm398, %v392, %v414
    %v419 = vsel %vm399, %v394, %v415
    %v420 = vpack.c.bf16 %v418, %v416
    %v421 = vpack.c.bf16 %v419, %v417
    %v422 = vld [vmem:[#allocation3] sm:$0xf]
    %v423 = vld [vmem:[#allocation3 + $0x4] sm:$0xf]
    %v424 = vld [vmem:[#allocation3 + $0x8] sm:$0xf]
    %v425 = vld [vmem:[#allocation3 + $0xc] sm:$0xf]
    %v426 = vld [vmem:[#allocation3 + $0x10] sm:$0xf]
    %v427 = vld [vmem:[#allocation3 + $0x14] sm:$0xf]
    %v428 = vld [vmem:[#allocation3 + $0x18] sm:$0xf]
    %v429 = vld [vmem:[#allocation3 + $0x1c] sm:$0xf]
    %v430 = vld [vmem:[#allocation3 + $0x20] sm:$0xf]
    %v431 = vld [vmem:[#allocation3 + $0x24] sm:$0xf]
    %v432 = vld [vmem:[#allocation3 + $0x28] sm:$0xf]
    %v433 = vld [vmem:[#allocation3 + $0x2c] sm:$0xf]
    %v434 = vld [vmem:[#allocation3 + $0x30] sm:$0xf]
    %v435 = vld [vmem:[#allocation3 + $0x34] sm:$0xf]
    %v436 = vld [vmem:[#allocation3 + $0x38] sm:$0xf]
    %v437 = vld [vmem:[#allocation3 + $0x3c] sm:$0xf]
    %v438 = vld [vmem:[#allocation3 + $0x40] sm:$0xf]
    %v439 = vld [vmem:[#allocation3 + $0x44] sm:$0xf]
    %s440 = sld [smem:[#allocation2]]
    %v441 = vstv %s440
    %v460 = vunpack.c.l.b16 %v422
    %v461 = vunpack.c.l.b16 %v423
    %v462 = vunpack.c.l.b16 %v424
    %v463 = vunpack.c.l.b16 %v425
    %v464 = vunpack.c.l.b16 %v426
    %v465 = vunpack.c.l.b16 %v427
    %v466 = vunpack.c.l.b16 %v428
    %v467 = vunpack.c.l.b16 %v429
    %v468 = vunpack.c.l.b16 %v430
    %v469 = vunpack.c.l.b16 %v431
    %v470 = vunpack.c.l.b16 %v432
    %v471 = vunpack.c.l.b16 %v433
    %v472 = vunpack.c.l.b16 %v434
    %v473 = vunpack.c.l.b16 %v435
    %v474 = vunpack.c.l.b16 %v436
    %v475 = vunpack.c.l.b16 %v437
    %v476 = vunpack.c.l.b16 %v438
    %v477 = vunpack.c.l.b16 %v439
    %v478 = vpack.c.b16 %v461, %v460
    %v479 = vpack.c.b16 %v463, %v462
    %v480 = vpack.c.b16 %v465, %v464
    %v481 = vpack.c.b16 %v467, %v466
    %v482 = vpack.c.b16 %v469, %v468
    %v483 = vpack.c.b16 %v471, %v470
    %v484 = vpack.c.b16 %v473, %v472
    %v485 = vpack.c.b16 %v475, %v474
    %v486 = vpack.c.b16 %v477, %v476
    %vm496 = vcmask 130048
    %v498 = vsel %vm496, %v421, 0
    %500 = vmatprep.subr.bf16.mxu0 0
    %501 = vmatpush1.bf16.msra.mxu0 %v485
    %502 = vmatprep.subr.bf16.mxu0 0
    %503 = vmatpush1.bf16.msra.mxu0 %v484
    %504 = vmatprep.subr.bf16.mxu0 0
    %505 = vmatpush1.bf16.msra.mxu0 %v483
    %506 = vmatprep.subr.bf16.mxu0 0
    %507 = vmatpush1.bf16.msra.mxu0 %v482
    %508 = vmatprep.subr.bf16.mxu0 0
    %509 = vmatpush1.bf16.msra.mxu0 %v481
    %510 = vmatprep.subr.bf16.mxu0 0
    %511 = vmatpush1.bf16.msra.mxu0 %v480
    %512 = vmatprep.subr.bf16.mxu0 0
    %513 = vmatpush1.bf16.msra.mxu0 %v479
    %514 = vmatprep.subr.bf16.mxu0 0
    %515 = vmatpush1.bf16.msra.mxu0 %v478
    %516 = vmatprep.subr.bf16.mxu0 0
    %517 = vmatpush2.bf16.msra.mxu0 0
    %518 = vmatprep.subr.bf16.mxu0 0
    %519 = vmatpush2.bf16.msra.mxu0 0
    %520 = vmatprep.subr.bf16.mxu0 0
    %521 = vmatpush2.bf16.msra.mxu0 0
    %522 = vmatprep.subr.bf16.mxu0 0
    %523 = vmatpush2.bf16.msra.mxu0 0
    %524 = vmatprep.subr.bf16.mxu0 0
    %525 = vmatpush2.bf16.msra.mxu0 0
    %526 = vmatprep.subr.bf16.mxu0 0
    %527 = vmatpush2.bf16.msra.mxu0 0
    %528 = vmatprep.subr.bf16.mxu0 0
    %529 = vmatpush2.bf16.msra.mxu0 0
    %530 = vmatprep.subr.bf16.mxu0 0
    %531 = vmatpush2.bf16.msra.mxu0 %v486
    %532 = vmatprep.mubr.bf16.mxu0 %v498
    %533 = vmatmul.mubr.bf16.gmra.mxu0 %v420
    %v534 = vpop.f32.mrf.mxu0
    %v535 = vadd.f32 %v441, %v534
    %v536 = vpop.f32.mrf.mxu0
    %v537 = vpop.f32.mrf.mxu0
    %v538 = vadd.f32 %v441, %v537
    %v539 = vpop.f32.mrf.mxu0
    %540 = vdwg.mxu0
    %541 = vst [vmem:[#allocation6] sm:$0xff] %v535
    %542 = vst [vmem:[#allocation6 + $0x8] sm:$0xff] %v538
    // Predicated region
    $region34: #{tpu_custom_call.1} parent=1 // pred_check
      _
    $region35: #{tpu_custom_call.1} parent=1 // pred_check_branch
      %544 = sbr.rel (0) target = $region37
    $region36: #{tpu_custom_call.1} parent=1 // pred_region
      %s546 = ssub.s32 256, 256
      %547 = vsyncadd [#allocation5], %s546
      %s548 = sshll.u32 [#allocation6], 4
      %s549 = int_to_ptr.vmem [resolvable:$true] %s548
      %554 = dma.vmem_to_hbm [thread:$0]  %s549, 256, %s7, [#allocation5], 128, 128, 8
    $region37: #{tpu_custom_call.1} parent=1 // pred_fallthru
      _
    // Predicated region
    $region38: #{tpu_custom_call.1} parent=1 // pred_check
      _
    $region39: #{tpu_custom_call.1} parent=1 // pred_check_branch
      %556 = sbr.rel (0) target = $region41
    $region40: #{tpu_custom_call.1} parent=1 // pred_region
      %557 = dma.done [#allocation5], 256
    $region41: #{tpu_custom_call.1} parent=1 // pred_fallthru
      _
    %558 = vsyncpa [#allocation4], 1
    %559 = vsyncpa [#allocation5], 1

</llo_original>
